<compile_context>
chip_gen: v7x
topology: tpu7x:2x2x1
jax: 0.10.0
libtpu: 0.0.40
codegen_flags: <defaults>
</compile_context>

<pallas_src>
import jax
import jax.numpy as jnp
from jax.experimental import pallas as pl
from jax.experimental.pallas import tpu as pltpu


def _emd_kernel(pred_ref, target_ref, out_ref):
    # pred_ref/target_ref: (C, TB) f32 — classes on sublanes, batch on lanes.
    C, _ = pred_ref.shape
    s = pred_ref[...].astype(jnp.float32) + target_ref[...].astype(jnp.float32)

    # Inclusive cumsum over the small, static class axis as C-1 unrolled row
    # adds (VPU work only, no MXU); accumulate sum of squared CDFs on the fly.
    acc = s[0:1, :]
    ssq = acc * acc
    for k in range(1, C):
        acc = acc + s[k : k + 1, :]
        ssq = ssq + acc * acc

    # mean over classes, then sqrt -> per-sample values, lane-dense output.
    out_ref[...] = jnp.sqrt(ssq * (1.0 / C))


def emd_loss(pred, target, *, max_tb=32768):
    assert pred.shape == target.shape and pred.ndim == 2
    B, C = pred.shape

    # Lane-dense layout: (B, C) -> (C, B); pad batch (lane) axis to the tile.
    tb = min(max_tb, pl.cdiv(B, 128) * 128)
    n_blocks = pl.cdiv(B, tb)
    Bp = n_blocks * tb

    pred_t = jnp.pad(pred.T.astype(jnp.float32), ((0, 0), (0, Bp - B)))
    target_t = jnp.pad(target.T.astype(jnp.float32), ((0, 0), (0, Bp - B)))

    per_sample = pl.pallas_call(
        _emd_kernel,
        out_shape=jax.ShapeDtypeStruct((1, Bp), jnp.float32),
        grid_spec=pltpu.PrefetchScalarGridSpec(
            num_scalar_prefetch=0,
            grid=(n_blocks,),
            in_specs=[
                pl.BlockSpec((C, tb), lambda i: (0, i)),
                pl.BlockSpec((C, tb), lambda i: (0, i)),
            ],
            out_specs=pl.BlockSpec((1, tb), lambda i: (0, i)),
        ),
        compiler_params=pltpu.CompilerParams(
            dimension_semantics=("parallel",),
        ),
        cost_estimate=pl.CostEstimate(
            flops=4 * B * C,
            transcendentals=B,
            bytes_accessed=2 * B * C * 4 + Bp * 4,
        ),
    )(pred_t, target_t)

    # Padded columns contribute sqrt(0) = 0; divide by the *true* batch size.
    return jnp.sum(per_sample) / B


def emd_loss_ref(pred, target):
    cdf_pred = jnp.cumsum(pred, axis=1)
    cdf_target = jnp.cumsum(target, axis=1)
    return jnp.mean(jnp.sqrt(jnp.mean((cdf_pred + cdf_target) ** 2, axis=1)))


if __name__ == "__main__":
    key = jax.random.PRNGKey(0)
    k1, k2 = jax.random.split(key)
    B, C = 8, 16  # batch=8, 16 score bins (NIMA-style distributions)
    pred = jax.nn.softmax(jax.random.normal(k1, (B, C), dtype=jnp.float32), axis=1)
    target = jax.nn.softmax(jax.random.normal(k2, (B, C), dtype=jnp.float32), axis=1)

    out = emd_loss(pred, target)
    jax.block_until_ready(out)

    ref = emd_loss_ref(pred, target)
    assert jnp.allclose(out, ref, atol=1e-5, rtol=1e-5), (out, ref)
    print("KERNEL_OK")
</pallas_src>

<mosaic_0001>
module attributes {stable_mosaic.version = 11 : i64} {
  func.func @_emd_kernel(%arg0: i32, %arg1: memref<16x128xf32, #tpu.memory_space<vmem>>, %arg2: memref<16x128xf32, #tpu.memory_space<vmem>>, %arg3: memref<1x128xf32, #tpu.memory_space<vmem>>) attributes {dimension_semantics = [#tpu.dimension_semantics<parallel>], iteration_bounds = array<i64: 1>, scalar_prefetch = 0 : i64, scratch_operands = 0 : i64, tpu.core_type = #tpu.core_type<tc>, window_params = [{transform_indices = @transform_0, window_bounds = array<i64: 16, 128>}, {transform_indices = @transform_1, window_bounds = array<i64: 16, 128>}, {transform_indices = @transform_2, window_bounds = array<i64: 1, 128>}]} {
    %c0 = arith.constant 0 : index
    %c0_0 = arith.constant 0 : index
    %0 = vector.load %arg1[%c0, %c0_0] : memref<16x128xf32, #tpu.memory_space<vmem>>, vector<16x128xf32>
    %c0_1 = arith.constant 0 : index
    %c0_2 = arith.constant 0 : index
    %1 = vector.load %arg2[%c0_1, %c0_2] : memref<16x128xf32, #tpu.memory_space<vmem>>, vector<16x128xf32>
    %2 = arith.addf %0, %1 : vector<16x128xf32>
    %3 = vector.extract_strided_slice %2 {offsets = [0, 0], sizes = [1, 128], strides = [1, 1]} : vector<16x128xf32> to vector<1x128xf32>
    %4 = arith.mulf %3, %3 : vector<1x128xf32>
    %5 = vector.extract_strided_slice %2 {offsets = [1, 0], sizes = [1, 128], strides = [1, 1]} : vector<16x128xf32> to vector<1x128xf32>
    %6 = arith.addf %3, %5 : vector<1x128xf32>
    %7 = arith.mulf %6, %6 : vector<1x128xf32>
    %8 = arith.addf %4, %7 : vector<1x128xf32>
    %9 = vector.extract_strided_slice %2 {offsets = [2, 0], sizes = [1, 128], strides = [1, 1]} : vector<16x128xf32> to vector<1x128xf32>
    %10 = arith.addf %6, %9 : vector<1x128xf32>
    %11 = arith.mulf %10, %10 : vector<1x128xf32>
    %12 = arith.addf %8, %11 : vector<1x128xf32>
    %13 = vector.extract_strided_slice %2 {offsets = [3, 0], sizes = [1, 128], strides = [1, 1]} : vector<16x128xf32> to vector<1x128xf32>
    %14 = arith.addf %10, %13 : vector<1x128xf32>
    %15 = arith.mulf %14, %14 : vector<1x128xf32>
    %16 = arith.addf %12, %15 : vector<1x128xf32>
    %17 = vector.extract_strided_slice %2 {offsets = [4, 0], sizes = [1, 128], strides = [1, 1]} : vector<16x128xf32> to vector<1x128xf32>
    %18 = arith.addf %14, %17 : vector<1x128xf32>
    %19 = arith.mulf %18, %18 : vector<1x128xf32>
    %20 = arith.addf %16, %19 : vector<1x128xf32>
    %21 = vector.extract_strided_slice %2 {offsets = [5, 0], sizes = [1, 128], strides = [1, 1]} : vector<16x128xf32> to vector<1x128xf32>
    %22 = arith.addf %18, %21 : vector<1x128xf32>
    %23 = arith.mulf %22, %22 : vector<1x128xf32>
    %24 = arith.addf %20, %23 : vector<1x128xf32>
    %25 = vector.extract_strided_slice %2 {offsets = [6, 0], sizes = [1, 128], strides = [1, 1]} : vector<16x128xf32> to vector<1x128xf32>
    %26 = arith.addf %22, %25 : vector<1x128xf32>
    %27 = arith.mulf %26, %26 : vector<1x128xf32>
    %28 = arith.addf %24, %27 : vector<1x128xf32>
    %29 = vector.extract_strided_slice %2 {offsets = [7, 0], sizes = [1, 128], strides = [1, 1]} : vector<16x128xf32> to vector<1x128xf32>
    %30 = arith.addf %26, %29 : vector<1x128xf32>
    %31 = arith.mulf %30, %30 : vector<1x128xf32>
    %32 = arith.addf %28, %31 : vector<1x128xf32>
    %33 = vector.extract_strided_slice %2 {offsets = [8, 0], sizes = [1, 128], strides = [1, 1]} : vector<16x128xf32> to vector<1x128xf32>
    %34 = arith.addf %30, %33 : vector<1x128xf32>
    %35 = arith.mulf %34, %34 : vector<1x128xf32>
    %36 = arith.addf %32, %35 : vector<1x128xf32>
    %37 = vector.extract_strided_slice %2 {offsets = [9, 0], sizes = [1, 128], strides = [1, 1]} : vector<16x128xf32> to vector<1x128xf32>
    %38 = arith.addf %34, %37 : vector<1x128xf32>
    %39 = arith.mulf %38, %38 : vector<1x128xf32>
    %40 = arith.addf %36, %39 : vector<1x128xf32>
    %41 = vector.extract_strided_slice %2 {offsets = [10, 0], sizes = [1, 128], strides = [1, 1]} : vector<16x128xf32> to vector<1x128xf32>
    %42 = arith.addf %38, %41 : vector<1x128xf32>
    %43 = arith.mulf %42, %42 : vector<1x128xf32>
    %44 = arith.addf %40, %43 : vector<1x128xf32>
    %45 = vector.extract_strided_slice %2 {offsets = [11, 0], sizes = [1, 128], strides = [1, 1]} : vector<16x128xf32> to vector<1x128xf32>
    %46 = arith.addf %42, %45 : vector<1x128xf32>
    %47 = arith.mulf %46, %46 : vector<1x128xf32>
    %48 = arith.addf %44, %47 : vector<1x128xf32>
    %49 = vector.extract_strided_slice %2 {offsets = [12, 0], sizes = [1, 128], strides = [1, 1]} : vector<16x128xf32> to vector<1x128xf32>
    %50 = arith.addf %46, %49 : vector<1x128xf32>
    %51 = arith.mulf %50, %50 : vector<1x128xf32>
    %52 = arith.addf %48, %51 : vector<1x128xf32>
    %53 = vector.extract_strided_slice %2 {offsets = [13, 0], sizes = [1, 128], strides = [1, 1]} : vector<16x128xf32> to vector<1x128xf32>
    %54 = arith.addf %50, %53 : vector<1x128xf32>
    %55 = arith.mulf %54, %54 : vector<1x128xf32>
    %56 = arith.addf %52, %55 : vector<1x128xf32>
    %57 = vector.extract_strided_slice %2 {offsets = [14, 0], sizes = [1, 128], strides = [1, 1]} : vector<16x128xf32> to vector<1x128xf32>
    %58 = arith.addf %54, %57 : vector<1x128xf32>
    %59 = arith.mulf %58, %58 : vector<1x128xf32>
    %60 = arith.addf %56, %59 : vector<1x128xf32>
    %61 = vector.extract_strided_slice %2 {offsets = [15, 0], sizes = [1, 128], strides = [1, 1]} : vector<16x128xf32> to vector<1x128xf32>
    %62 = arith.addf %58, %61 : vector<1x128xf32>
    %63 = arith.mulf %62, %62 : vector<1x128xf32>
    %64 = arith.addf %60, %63 : vector<1x128xf32>
    %cst = arith.constant 6.250000e-02 : f32
    %65 = vector.broadcast %cst : f32 to vector<1x128xf32>
    %66 = arith.mulf %64, %65 : vector<1x128xf32>
    %67 = math.sqrt %66 : vector<1x128xf32>
    %c0_3 = arith.constant 0 : index
    %c0_4 = arith.constant 0 : index
    %68 = vector.load %arg3[%c0_3, %c0_4] : memref<1x128xf32, #tpu.memory_space<vmem>>, vector<1x128xf32>
    tpu.vector_store %arg3[%c0_3, %c0_4], %67 {strides = array<i32>} : memref<1x128xf32, #tpu.memory_space<vmem>>, vector<1x128xf32>,
    return
  }
  func.func @transform_0(%arg0: i32) -> (i32, i32) {
    %c0_i32 = arith.constant 0 : i32
    %c0_i32_0 = arith.constant 0 : i32
    return %c0_i32, %arg0 : i32, i32
  }
  func.func @transform_1(%arg0: i32) -> (i32, i32) {
    %c0_i32 = arith.constant 0 : i32
    %c0_i32_0 = arith.constant 0 : i32
    return %c0_i32, %arg0 : i32, i32
  }
  func.func @transform_2(%arg0: i32) -> (i32, i32) {
    %c0_i32 = arith.constant 0 : i32
    %c0_i32_0 = arith.constant 0 : i32
    return %c0_i32, %arg0 : i32, i32
  }
}

</mosaic_0001>

<llo_original>
// kernel: tpu_custom_call.1
$region0: #{tpu_custom_call.1}
  #allocation0 [shape = 'u32[]', space=smem, size = 0x4, offset = 0x4, fixed_abs, tag = 'smem constant byte address 0x4 - core index']
  #allocation1 [shape = 'u32[144,128]{1,0:T(1,128)}', space=vmem, size = 0x12000, scoped, tag = 'internal scratch']
  %s0 = inlined_call_operand.hbm [shape: f32[16,128], index: 0, kind: input, shape index: {}]
  %s1 = inlined_call_operand.hbm [shape: f32[16,128], index: 1, kind: input, shape index: {}]
  %s2 = inlined_call_operand.hbm [shape: f32[1,128], index: 2, kind: output, shape index: {}]
  %s3 = sld [smem:[#allocation0]]
  $region26: #{tpu_custom_call.1} parent=0
    _
  %s5 = ssub.s32 1, %s3
  %s6 = scalar_select 0, %s5, %s3
  $region1: #{tpu_custom_call.1} parent=0
    #allocation2 [shape = 'u8[8192]{0}', space=vmem, size = 0x2000, scoped, tag = 'input window, operand 0, single buffered']
    #allocation3 [shape = 's32[1]{0}', space=sflag, size = 0x4, scoped, tag = 'scoped memory for tpu_custom_call.1']
    #allocation4 [shape = 's32[1]{0}', space=sflag, size = 0x4, scoped, tag = 'scoped memory for tpu_custom_call.1']
    #allocation5 [shape = 'u8[8192]{0}', space=vmem, size = 0x2000, scoped, tag = 'input window, operand 1, single buffered']
    #allocation6 [shape = 's32[1]{0}', space=sflag, size = 0x4, scoped, tag = 'scoped memory for tpu_custom_call.1']
    #allocation7 [shape = 'u8[512]{0}', space=vmem, size = 0x400, scoped, tag = 'output window, operand 0, single buffered']
    %7 = vsyncpa [#allocation3], 0
    %8 = vsyncpa [#allocation6], 0
    %9 = vsyncpa [#allocation4], 0
    // Predicated region
    $region2: #{tpu_custom_call.1} parent=1 // pred_check
      _
    $region3: #{tpu_custom_call.1} parent=1 // pred_check_branch
      %11 = sbr.rel (0) target = $region5
    $region4: #{tpu_custom_call.1} parent=1 // pred_region
      %s13 = ssub.s32 256, 256
      %14 = vsyncadd [#allocation3], %s13
      %s15 = sshll.u32 [#allocation2], 4
      %s16 = int_to_ptr.vmem [resolvable:$true] %s15
      %21 = dma.hbm_to_vmem [thread:$0]  %s0, 256, %s16, [#allocation3], 128, 128, 8
    $region5: #{tpu_custom_call.1} parent=1 // pred_fallthru
      _
    // Predicated region
    $region6: #{tpu_custom_call.1} parent=1 // pred_check
      _
    $region7: #{tpu_custom_call.1} parent=1 // pred_check_branch
      %23 = sbr.rel (0) target = $region9
    $region8: #{tpu_custom_call.1} parent=1 // pred_region
      %s25 = ssub.s32 256, 256
      %26 = vsyncadd [#allocation6], %s25
      %s27 = sshll.u32 [#allocation5], 4
      %s28 = int_to_ptr.vmem [resolvable:$true] %s27
      %33 = dma.hbm_to_vmem [thread:$0]  %s1, 256, %s28, [#allocation6], 128, 128, 8
    $region9: #{tpu_custom_call.1} parent=1 // pred_fallthru
      _
    // Predicated region
    $region10: #{tpu_custom_call.1} parent=1 // pred_check
      _
    $region11: #{tpu_custom_call.1} parent=1 // pred_check_branch
      %35 = sbr.rel (0) target = $region13
    $region12: #{tpu_custom_call.1} parent=1 // pred_region
      %36 = dma.done [#allocation3], 256
    $region13: #{tpu_custom_call.1} parent=1 // pred_fallthru
      _
    // Predicated region
    $region14: #{tpu_custom_call.1} parent=1 // pred_check
      _
    $region15: #{tpu_custom_call.1} parent=1 // pred_check_branch
      %38 = sbr.rel (0) target = $region17
    $region16: #{tpu_custom_call.1} parent=1 // pred_region
      %39 = dma.done [#allocation6], 256
    $region17: #{tpu_custom_call.1} parent=1 // pred_fallthru
      _
    %v40 = vld [vmem:[#allocation2] sm:$0xff]
    %v41 = vld [vmem:[#allocation2 + $0x8] sm:$0xff]
    %v42 = vld [vmem:[#allocation5] sm:$0xff]
    %v43 = vld [vmem:[#allocation5 + $0x8] sm:$0xff]
    %v44 = vadd.f32 %v40, %v42
    %v45 = vadd.f32 %v41, %v43
    %v46 = vmul.f32 %v44, %v44
    %v48 = vrot.slane %v44, 1
    %v50 = vadd.f32 %v44, %v48
    %v51 = vmul.f32 %v50, %v50
    %v52 = vadd.f32 %v46, %v51
    %v53 = vrot.slane %v44, 2
    %v55 = vadd.f32 %v50, %v53
    %v56 = vmul.f32 %v55, %v55
    %v57 = vadd.f32 %v52, %v56
    %v58 = vrot.slane %v44, 3
    %v60 = vadd.f32 %v55, %v58
    %v61 = vmul.f32 %v60, %v60
    %v62 = vadd.f32 %v57, %v61
    %v63 = vrot.slane %v44, 4
    %v65 = vadd.f32 %v60, %v63
    %v66 = vmul.f32 %v65, %v65
    %v67 = vadd.f32 %v62, %v66
    %v68 = vrot.slane %v44, 5
    %v70 = vadd.f32 %v65, %v68
    %v71 = vmul.f32 %v70, %v70
    %v72 = vadd.f32 %v67, %v71
    %v73 = vrot.slane %v44, 6
    %v75 = vadd.f32 %v70, %v73
    %v76 = vmul.f32 %v75, %v75
    %v77 = vadd.f32 %v72, %v76
    %v78 = vrot.slane %v44, 7
    %v80 = vadd.f32 %v75, %v78
    %v81 = vmul.f32 %v80, %v80
    %v82 = vadd.f32 %v77, %v81
    %v83 = vadd.f32 %v80, %v45
    %v84 = vmul.f32 %v83, %v83
    %v85 = vadd.f32 %v82, %v84
    %v87 = vrot.slane %v45, 1
    %v89 = vadd.f32 %v83, %v87
    %v90 = vmul.f32 %v89, %v89
    %v91 = vadd.f32 %v85, %v90
    %v92 = vrot.slane %v45, 2
    %v94 = vadd.f32 %v89, %v92
    %v95 = vmul.f32 %v94, %v94
    %v96 = vadd.f32 %v91, %v95
    %v97 = vrot.slane %v45, 3
    %v99 = vadd.f32 %v94, %v97
    %v100 = vmul.f32 %v99, %v99
    %v101 = vadd.f32 %v96, %v100
    %v102 = vrot.slane %v45, 4
    %v104 = vadd.f32 %v99, %v102
    %v105 = vmul.f32 %v104, %v104
    %v106 = vadd.f32 %v101, %v105
    %v107 = vrot.slane %v45, 5
    %v109 = vadd.f32 %v104, %v107
    %v110 = vmul.f32 %v109, %v109
    %v111 = vadd.f32 %v106, %v110
    %v112 = vrot.slane %v45, 6
    %v114 = vadd.f32 %v109, %v112
    %v115 = vmul.f32 %v114, %v114
    %v116 = vadd.f32 %v111, %v115
    %v117 = vrot.slane %v45, 7
    %v119 = vadd.f32 %v114, %v117
    %v120 = vmul.f32 %v119, %v119
    %v121 = vadd.f32 %v116, %v120
    %v122 = vmul.f32 %v121, 0.0625
    %v123 = vrsqrt.pop %v122
    %v124 = vmul.f32 %v122, %v123
    %vm125 = vcmp.eq.f32.partialorder %v122, inf
    %v126 = vsel %vm125, %v122, %v124
    %vm127 = vcmp.eq.f32.partialorder %v122, 0.0
    %v128 = vand.u32 %v122, 2147483648
    %v129 = vsel %vm127, %v128, %v126
    %130 = vst [vmem:[#allocation7] sm:$0x1] %v129
    // Predicated region
    $region18: #{tpu_custom_call.1} parent=1 // pred_check
      _
    $region19: #{tpu_custom_call.1} parent=1 // pred_check_branch
      %132 = sbr.rel (0) target = $region21
    $region20: #{tpu_custom_call.1} parent=1 // pred_region
      %s134 = ssub.s32 16, 16
      %135 = vsyncadd [#allocation4], %s134
      %s137 = sshll.u32 [#allocation7], 4
      %s138 = int_to_ptr.vmem [resolvable:$true] %s137
      %140 = dma.vmem_to_hbm [thread:$0]  %s138, 16, %s2, [#allocation4]
    $region21: #{tpu_custom_call.1} parent=1 // pred_fallthru
      _
    // Predicated region
    $region22: #{tpu_custom_call.1} parent=1 // pred_check
      _
    $region23: #{tpu_custom_call.1} parent=1 // pred_check_branch
      %142 = sbr.rel (0) target = $region25
    $region24: #{tpu_custom_call.1} parent=1 // pred_region
      %143 = dma.done [#allocation4], 16
    $region25: #{tpu_custom_call.1} parent=1 // pred_fallthru
      _
    %144 = vsyncpa [#allocation3], 1
    %145 = vsyncpa [#allocation6], 1
    %146 = vsyncpa [#allocation4], 1

</llo_original>
